<compile_context>
chip_gen: v6e
topology: v6e:2x2x1
jax: 0.10.0
libtpu: 0.0.40
codegen_flags: <defaults>
</compile_context>

<pallas_src>
import jax
import jax.numpy as jnp
from jax.experimental import pallas as pl
from jax.experimental.pallas import tpu as pltpu

_FOLD = 32              # rows packed per folded kernel row (32*4=128 in lanes)
_TM_CAP = 4096          # folded rows per grid step (~20 MiB double-buffered)
_TARGET_STEPS = 4       # aim for >= 4 grid steps (v7x has 2 TensorCores)
_MIN_PALLAS_ROWS = 2048  # below this, fused XLA beats fixed kernel overhead


def _decoder_kernel(x_ref, w_ref, b_ref, o_ref):
    # x_ref: (TM, FOLD*cin)   folded input rows (128 lanes, unmasked loads)
    # w_ref: (FOLD*cin, FOLD*cout) block-diagonal weight (VMEM-resident)
    # b_ref: (1, FOLD*cout)   tiled bias (VMEM-resident)
    # o_ref: (TM, FOLD*cout)  lane-dense (512-wide) output slab
    y = jnp.dot(x_ref[...], w_ref[...], preferred_element_type=jnp.float32)
    y = y + b_ref[...]
    o_ref[...] = jnp.maximum(y, 0.0).astype(o_ref.dtype)


def _round_up(a, b):
    return ((a + b - 1) // b) * b


def decoder_forward(x, fc_weight, fc_bias):
    """relu(x @ fc_weight.T + fc_bias), matching nn.Linear on the last dim.

    x:         (..., in_channal)           float32
    fc_weight: (out_channel, in_channal)   PyTorch layout
    fc_bias:   (out_channel,)
    """
    cin = x.shape[-1]
    cout, cin_w = fc_weight.shape
    assert cin == cin_w, "last dim of x must equal in_channal"
    lead = x.shape[:-1]

    x2 = x.reshape(-1, cin)
    n = x2.shape[0]

    if n < _MIN_PALLAS_ROWS:
        # Tiny problem: whole thing fits in a few vregs; fixed pallas_call
        # overhead would dominate.  Fused XLA op is as fast or faster.
        y = jnp.maximum(jnp.einsum("ni,oi->no", x2, fc_weight) + fc_bias, 0.0)
        return y.reshape(*lead, cout)

    fold_cin = _FOLD * cin
    fold_cout = _FOLD * cout

    # Pad rows only to a multiple of _FOLD (< 32 extra rows).  Padded rows
    # compute relu(bias); they are discarded by the trailing [:n] slice.
    rows_f = pl.cdiv(n, _FOLD)
    n_pad = rows_f * _FOLD
    if n_pad != n:
        x2 = jnp.pad(x2, ((0, n_pad - n), (0, 0)))
    x_f = x2.reshape(rows_f, fold_cin)          # free row-major view

    # Block-diagonal weight: w_bd[f*cin + i, f*cout + j] = W.T[i, j]
    # so  y_f[r, g*cout + j] = sum_i x[r*FOLD + g, i] * W.T[i, j].
    w_t = fc_weight.T.astype(x.dtype)           # (cin, cout)
    eye = jnp.eye(_FOLD, dtype=x.dtype)
    w_bd = jnp.einsum("fg,ij->figj", eye, w_t).reshape(fold_cin, fold_cout)
    b_bd = jnp.tile(fc_bias.astype(x.dtype), _FOLD).reshape(1, fold_cout)

    # Row tile: as big as possible (<= ~20 MiB double-buffered in+out, safe
    # on v7x's 64 MiB VMEM) while keeping >= ~_TARGET_STEPS grid steps so
    # both TensorCores run under the "parallel" semantics.
    tm = max(8, min(_TM_CAP, _round_up(pl.cdiv(rows_f, _TARGET_STEPS), 8)))
    grid = (pl.cdiv(rows_f, tm),)               # ragged last block is masked

    flops = 2 * n * cin * cout
    bytes_accessed = 4 * (n * cin + n * cout + fold_cin * fold_cout + fold_cout)

    y_f = pl.pallas_call(
        _decoder_kernel,
        out_shape=jax.ShapeDtypeStruct((rows_f, fold_cout), x.dtype),
        grid_spec=pltpu.PrefetchScalarGridSpec(
            num_scalar_prefetch=0,
            grid=grid,
            in_specs=[
                pl.BlockSpec((tm, fold_cin), lambda i: (i, 0)),
                pl.BlockSpec((fold_cin, fold_cout), lambda i: (0, 0)),
                pl.BlockSpec((1, fold_cout), lambda i: (0, 0)),
            ],
            out_specs=pl.BlockSpec((tm, fold_cout), lambda i: (i, 0)),
        ),
        compiler_params=pltpu.CompilerParams(
            dimension_semantics=("parallel",),
            # Explicit limit: > v5e's 16 MiB scoped default, <= v7x's 32 MiB
            # scoped default (fits its 64 MiB physical VMEM).
            vmem_limit_bytes=32 * 1024 * 1024,
        ),
        cost_estimate=pl.CostEstimate(
            flops=flops, transcendentals=0, bytes_accessed=bytes_accessed),
    )(x_f, w_bd, b_bd)

    y = y_f.reshape(n_pad, cout)                # free row-major view
    if n_pad != n:
        y = y[:n]
    return y.reshape(*lead, cout)


def init_decoder_params(key, out_channel, in_channal=4, hidden_channel=32):
    """Deterministic parameter init mirroring Decoder.__init__ / restart():
    xavier-uniform weights, zero biases."""
    k_fc, k_fc1, k_fc2 = jax.random.split(key, 3)

    def xavier(k, fan_out, fan_in):
        limit = jnp.sqrt(6.0 / (fan_in + fan_out))
        return jax.random.uniform(
            k, (fan_out, fan_in), jnp.float32, minval=-limit, maxval=limit)

    return {
        "fc_w": xavier(k_fc, out_channel, in_channal),
        "fc_b": jnp.zeros((out_channel,), jnp.float32),
        # fc1 / fc2 exist in the module but are unused by forward.
        "fc1_w": xavier(k_fc1, hidden_channel, in_channal),
        "fc1_b": jnp.zeros((hidden_channel,), jnp.float32),
        "fc2_w": xavier(k_fc2, out_channel, hidden_channel),
        "fc2_b": jnp.zeros((out_channel,), jnp.float32),
    }


def _ref_forward(x, w, b):
    return jnp.maximum(jnp.einsum("...i,oi->...o", x, w) + b, 0.0)


if __name__ == "__main__":
    key = jax.random.PRNGKey(0)
    k_x, k_p, k_x2, k_x3, k_b = jax.random.split(key, 5)

    in_channal = 4
    out_channel = 16
    hidden_channel = 32
    params = init_decoder_params(k_p, out_channel, in_channal, hidden_channel)

    # 1) Small per-pixel decode of a (2, 16, 16, 4) feature map (tiny-N
    #    fallback path).
    x = jax.random.normal(k_x, (2, 16, 16, in_channal), jnp.float32)
    y = jax.block_until_ready(
        decoder_forward(x, params["fc_w"], params["fc_b"]))
    y_ref = _ref_forward(x, params["fc_w"], params["fc_b"])
    assert y.shape == (2, 16, 16, out_channel)
    assert jnp.allclose(y, y_ref, atol=1e-5, rtol=1e-5)

    # 2) Pallas path, row count NOT divisible by the fold factor, with a
    #    NONZERO bias (padded rows produce relu(bias) and must be discarded).
    bias_nz = 0.1 * jax.random.normal(k_b, (out_channel,), jnp.float32)
    x_odd = jax.random.normal(k_x2, (8237, in_channal), jnp.float32)
    y_odd = jax.block_until_ready(
        decoder_forward(x_odd, params["fc_w"], bias_nz))
    assert y_odd.shape == (8237, out_channel)
    assert jnp.allclose(
        y_odd, _ref_forward(x_odd, params["fc_w"], bias_nz),
        atol=1e-5, rtol=1e-5)

    # 3) Large batch: exact multiple of the fold, multi-step parallel grid
    #    (exercises pipelining / megacore sharding, no pad or slice copies).
    x_big = jax.random.normal(k_x3, (262144, in_channal), jnp.float32)
    y_big = jax.block_until_ready(
        decoder_forward(x_big, params["fc_w"], params["fc_b"]))
    assert jnp.allclose(
        y_big, _ref_forward(x_big, params["fc_w"], params["fc_b"]),
        atol=1e-5, rtol=1e-5)

    print("KERNEL_OK")
</pallas_src>

<mosaic_0001>
module attributes {stable_mosaic.version = 11 : i64} {
  func.func @_decoder_kernel(%arg0: i32, %arg1: memref<72x128xf32, #tpu.memory_space<vmem>>, %arg2: memref<128x512xf32, #tpu.memory_space<vmem>>, %arg3: memref<1x512xf32, #tpu.memory_space<vmem>>, %arg4: memref<72x512xf32, #tpu.memory_space<vmem>>) attributes {dimension_semantics = [#tpu.dimension_semantics<parallel>], iteration_bounds = array<i64: 4>, scalar_prefetch = 0 : i64, scratch_operands = 0 : i64, tpu.core_type = #tpu.core_type<tc>, window_params = [{transform_indices = @transform_0, window_bounds = array<i64: 72, 128>}, {pipeline_mode = #tpu.pipeline_mode<synchronous>, transform_indices = @transform_1, window_bounds = array<i64: 128, 512>}, {pipeline_mode = #tpu.pipeline_mode<synchronous>, transform_indices = @transform_2, window_bounds = array<i64: 1, 512>}, {transform_indices = @transform_3, window_bounds = array<i64: 72, 512>}]} {
    %c0 = arith.constant 0 : index
    %c0_0 = arith.constant 0 : index
    %0 = vector.load %arg1[%c0, %c0_0] : memref<72x128xf32, #tpu.memory_space<vmem>>, vector<72x128xf32>
    %c0_1 = arith.constant 0 : index
    %c0_2 = arith.constant 0 : index
    %1 = vector.load %arg2[%c0_1, %c0_2] : memref<128x512xf32, #tpu.memory_space<vmem>>, vector<128x512xf32>
    %cst = arith.constant dense<0.000000e+00> : vector<72x512xf32>
    %2 = tpu.matmul %0, %1, %cst {dimension_numbers = #tpu.dot_dimension_numbers<[1], [0], [0], [1], [0, 0, 1, 1], [], []>} : vector<72x128xf32>, vector<128x512xf32>, vector<72x512xf32> -> vector<72x512xf32>
    %c0_3 = arith.constant 0 : index
    %c0_4 = arith.constant 0 : index
    %3 = vector.load %arg3[%c0_3, %c0_4] : memref<1x512xf32, #tpu.memory_space<vmem>>, vector<1x512xf32>
    %4 = vector.broadcast %3 : vector<1x512xf32> to vector<72x512xf32>
    %5 = arith.addf %2, %4 : vector<72x512xf32>
    %cst_5 = arith.constant 0.000000e+00 : f32
    %6 = vector.broadcast %cst_5 : f32 to vector<72x512xf32>
    %7 = arith.maximumf %5, %6 : vector<72x512xf32>
    %c0_6 = arith.constant 0 : index
    %c0_7 = arith.constant 0 : index
    %8 = vector.load %arg4[%c0_6, %c0_7] : memref<72x512xf32, #tpu.memory_space<vmem>>, vector<72x512xf32>
    tpu.vector_store %arg4[%c0_6, %c0_7], %7 {strides = array<i32>} : memref<72x512xf32, #tpu.memory_space<vmem>>, vector<72x512xf32>,
    return
  }
  func.func @transform_0(%arg0: i32) -> (i32, i32) {
    %c0_i32 = arith.constant 0 : i32
    %c0_i32_0 = arith.constant 0 : i32
    return %arg0, %c0_i32 : i32, i32
  }
  func.func @transform_1(%arg0: i32) -> (i32, i32) {
    %c0_i32 = arith.constant 0 : i32
    %c0_i32_0 = arith.constant 0 : i32
    %c0_i32_1 = arith.constant 0 : i32
    return %c0_i32, %c0_i32_0 : i32, i32
  }
  func.func @transform_2(%arg0: i32) -> (i32, i32) {
    %c0_i32 = arith.constant 0 : i32
    %c0_i32_0 = arith.constant 0 : i32
    %c0_i32_1 = arith.constant 0 : i32
    return %c0_i32, %c0_i32_0 : i32, i32
  }
  func.func @transform_3(%arg0: i32) -> (i32, i32) {
    %c0_i32 = arith.constant 0 : i32
    %c0_i32_0 = arith.constant 0 : i32
    return %arg0, %c0_i32 : i32, i32
  }
}

</mosaic_0001>

<llo_original>
// kernel: tpu_custom_call.1
$region0: #{tpu_custom_call.1}
  #allocation0 [shape = 'u32[]', space=smem, size = 0x4, offset = 0x4, fixed_abs, tag = 'smem constant byte address 0x4 - core index']
  #allocation1 [shape = 'u32[144,128]{1,0:T(1,128)}', space=vmem, size = 0x12000, scoped, tag = 'internal scratch']
  %s0 = inlined_call_operand.hbm [shape: f32[258,128], index: 0, kind: input, shape index: {}]
  %s1 = inlined_call_operand.hbm [shape: f32[128,512], index: 1, kind: input, shape index: {}]
  %s2 = inlined_call_operand.hbm [shape: f32[1,512], index: 2, kind: input, shape index: {}]
  %s3 = inlined_call_operand.hbm [shape: f32[258,512], index: 3, kind: output, shape index: {}]
  %s4 = sld [smem:[#allocation0]]
  $region57: #{tpu_custom_call.1} parent=0
    _
  %s6 = ssub.s32 1, %s4
  %s7 = scalar_select 0, %s6, %s4
  $region1: #{tpu_custom_call.1} parent=0
    #allocation2 [shape = 'u8[73728]{0}', space=vmem, size = 0x12000, scoped, tag = 'input window, operand 0']
    #allocation3 [shape = 's32[2]{0}', space=sflag, size = 0x8, scoped, tag = 'scoped memory for tpu_custom_call.1']
    #allocation4 [shape = 's32[2]{0}', space=sflag, size = 0x8, scoped, tag = 'scoped memory for tpu_custom_call.1']
    #allocation5 [shape = 'u8[262144]{0}', space=vmem, size = 0x40000, scoped, tag = 'input window, operand 1, single buffered']
    #allocation6 [shape = 's32[1]{0}', space=sflag, size = 0x4, scoped, tag = 'scoped memory for tpu_custom_call.1']
    #allocation7 [shape = 'u8[2048]{0}', space=vmem, size = 0x800, scoped, tag = 'input window, operand 2, single buffered']
    #allocation8 [shape = 'u8[294912]{0}', space=vmem, size = 0x48000, scoped, tag = 'output window, operand 0']
    %8 = vsyncpa [#allocation3], 0
    %s9 = scalar_lea.sflag [#allocation3], 1
    %10 = vsyncpa %s9, 0
    %11 = vsyncpa [#allocation6], 0
    %12 = vsyncpa [#allocation4], 0
    %s13 = scalar_lea.sflag [#allocation4], 1
    %14 = vsyncpa %s13, 0
    loop: start=0, step=1, limit=6
    $region2: #{tpu_custom_call.1} parent=1 // loop_pre_header
      _
    $region3: #{tpu_custom_call.1} parent=1 // loop_header
      %s16 = sphi 0, %s20
      %p17 = scmp.ge.s32.totalorder %s16, 6
      %s26 = sphi 0, %s28
      %s29 = sphi 0, %s26
      %s30 = sphi 0, %s29
      %s46 = sphi 0, %s30
      %s50 = sphi 0, %s50
      %s52 = sphi 0, %s50
      %s53 = sphi 0, %s52
      %s67 = sphi 0, %s53
      %s71 = sphi 0, %s71
      %s73 = sphi 0, %s71
      %s74 = sphi 0, %s73
      %s88 = sphi 0, %s74
      %s94 = sphi 0, %s96
      %s97 = sphi 0, %s94
      %s98 = sphi 0, %s97
      %s114 = sphi 0, %s98
    $region4: #{tpu_custom_call.1} parent=1 // loop_header_branch
      %19 = sbr.rel (%p17) target = $region8
    $region5: #{tpu_custom_call.1} parent=1 // loop_body
      %s21 = ssub.s32 %s16, 1
      %s22 = ssub.s32 %s16, 2
      %s23 = sadd.s32 %s16, 1
      %s24 = ssub.s32 %s16, %s23
      %p25 = scmp.eq.s32.totalorder %s24, 0
      %s27 = sadd.s32 %s26, 1
      %s28 = scalar_select %p25, %s26, %s27
      %p31 = pneg %p25
      %p32 = scmp.eq.s32.totalorder %s16, 3
      %p33 = por %p31, %p32
      %p34 = scmp.ne.s32.totalorder %s26, %s29
      %p35 = scmp.eq.s32.totalorder %s16, 0
      %p36 = por %p34, %p35
      %p37 = scmp.ne.s32.totalorder %s26, %s29
      %p38 = scmp.eq.s32.totalorder %s21, 3
      %p39 = por %p37, %p38
      %p40 = scmp.ne.s32.totalorder %s29, %s30
      %p41 = scmp.eq.s32.totalorder %s21, 0
      %p42 = por %p40, %p41
      %p43 = scmp.ne.s32.totalorder %s29, %s30
      %p44 = scmp.eq.s32.totalorder %s22, 3
      %p45 = por %p43, %p44
      %p47 = scmp.ne.s32.totalorder %s30, %s46
      %p48 = scmp.eq.s32.totalorder %s22, 0
      %p49 = por %p47, %p48
      %s51 = sadd.s32 %s50, 1
      %p54 = scmp.eq.s32.totalorder %s16, 3
      %p55 = scmp.ne.s32.totalorder %s50, %s52
      %p56 = scmp.eq.s32.totalorder %s16, 0
      %p57 = por %p55, %p56
      %p58 = scmp.ne.s32.totalorder %s50, %s52
      %p59 = scmp.eq.s32.totalorder %s21, 3
      %p60 = por %p58, %p59
      %p61 = scmp.ne.s32.totalorder %s52, %s53
      %p62 = scmp.eq.s32.totalorder %s21, 0
      %p63 = por %p61, %p62
      %p64 = scmp.ne.s32.totalorder %s52, %s53
      %p65 = scmp.eq.s32.totalorder %s22, 3
      %p66 = por %p64, %p65
      %p68 = scmp.ne.s32.totalorder %s53, %s67
      %p69 = scmp.eq.s32.totalorder %s22, 0
      %p70 = por %p68, %p69
      %s72 = sadd.s32 %s71, 1
      %p75 = scmp.eq.s32.totalorder %s16, 3
      %p76 = scmp.ne.s32.totalorder %s71, %s73
      %p77 = scmp.eq.s32.totalorder %s16, 0
      %p78 = por %p76, %p77
      %p79 = scmp.ne.s32.totalorder %s71, %s73
      %p80 = scmp.eq.s32.totalorder %s21, 3
      %p81 = por %p79, %p80
      %p82 = scmp.ne.s32.totalorder %s73, %s74
      %p83 = scmp.eq.s32.totalorder %s21, 0
      %p84 = por %p82, %p83
      %p85 = scmp.ne.s32.totalorder %s73, %s74
      %p86 = scmp.eq.s32.totalorder %s22, 3
      %p87 = por %p85, %p86
      %p89 = scmp.ne.s32.totalorder %s74, %s88
      %p90 = scmp.eq.s32.totalorder %s22, 0
      %p91 = por %p89, %p90
      %s92 = ssub.s32 %s16, %s23
      %p93 = scmp.eq.s32.totalorder %s92, 0
      %s95 = sadd.s32 %s94, 1
      %s96 = scalar_select %p93, %s94, %s95
      %p99 = pneg %p93
      %p100 = scmp.eq.s32.totalorder %s16, 3
      %p101 = por %p99, %p100
      %p102 = scmp.ne.s32.totalorder %s94, %s97
      %p103 = scmp.eq.s32.totalorder %s16, 0
      %p104 = por %p102, %p103
      %p105 = scmp.ne.s32.totalorder %s94, %s97
      %p106 = scmp.eq.s32.totalorder %s21, 3
      %p107 = por %p105, %p106
      %p108 = scmp.ne.s32.totalorder %s97, %s98
      %p109 = scmp.eq.s32.totalorder %s21, 0
      %p110 = por %p108, %p109
      %p111 = scmp.ne.s32.totalorder %s97, %s98
      %p112 = scmp.eq.s32.totalorder %s22, 3
      %p113 = por %p111, %p112
      %p115 = scmp.ne.s32.totalorder %s98, %s114
      %p116 = scmp.eq.s32.totalorder %s22, 0
      %p117 = por %p115, %p116
      %p118 = scmp.le.s32.totalorder 1, %s16
      %p119 = scmp.lt.s32.totalorder %s16, 5
      %p120 = pnand %p118, %p119
      %p121 = pneg %p120
      // Predicated region
      $region9: #{tpu_custom_call.1} parent=5 // pred_check
        _
      $region10: #{tpu_custom_call.1} parent=5 // pred_check_branch
        %123 = sbr.rel (%p120) target = $region12
      $region11: #{tpu_custom_call.1} parent=5 // pred_region
        %s124 = ssub.s32 %s16, 1
        // Predicated region
        $region13: #{tpu_custom_call.1} parent=11 // pred_check
          %p125 = pneg %p63
        $region14: #{tpu_custom_call.1} parent=11 // pred_check_branch
          %127 = sbr.rel (%p125) target = $region16
        $region15: #{tpu_custom_call.1} parent=11 // pred_region
          %s129 = ssub.s32 8192, 8192
          %130 = vsyncadd [#allocation6], %s129
          %s131 = sshll.u32 [#allocation5], 4
          %s132 = int_to_ptr.vmem [resolvable:$true] %s131
          %137 = dma.hbm_to_vmem [thread:$0]  %s1, 8192, %s132, [#allocation6], 512, 512, 32
        $region16: #{tpu_custom_call.1} parent=11 // pred_fallthru
          _
        // Predicated region
        $region17: #{tpu_custom_call.1} parent=11 // pred_check
          %p138 = pneg %p84
        $region18: #{tpu_custom_call.1} parent=11 // pred_check_branch
          %140 = sbr.rel (%p138) target = $region20
        $region19: #{tpu_custom_call.1} parent=11 // pred_region
          %s142 = ssub.s32 64, 64
          %143 = vsyncadd [#allocation6], %s142
          %s145 = sshll.u32 [#allocation7], 4
          %s146 = int_to_ptr.vmem [resolvable:$true] %s145
          %148 = dma.hbm_to_vmem [thread:$0]  %s2, 64, %s146, [#allocation6]
        $region20: #{tpu_custom_call.1} parent=11 // pred_fallthru
          _
      $region12: #{tpu_custom_call.1} parent=5 // pred_fallthru
        _
      %p149 = scmp.lt.s32.totalorder %s16, 4
      // Predicated region
      $region21: #{tpu_custom_call.1} parent=5 // pred_check
        %p150 = pneg %p149
      $region22: #{tpu_custom_call.1} parent=5 // pred_check_branch
        %152 = sbr.rel (%p150) target = $region24
      $region23: #{tpu_custom_call.1} parent=5 // pred_region
        // Predicated region
        $region25: #{tpu_custom_call.1} parent=23 // pred_check
          %p153 = pneg %p36
        $region26: #{tpu_custom_call.1} parent=23 // pred_check_branch
          %155 = sbr.rel (%p153) target = $region28
        $region27: #{tpu_custom_call.1} parent=23 // pred_region
          %s156 = sand.u32 %s26, 1
          %s157 = scalar_lea.sflag [#allocation3], %s156
          %s158 = sand.u32 %s26, 1
          %s159 = smul.addr %s158, 72
          %s160 = scalar_lea.vmem [#allocation2], %s159
          %s161 = smul.u32 9, %s16
          %s162 = ssub.s32 33, %s161
          %p163 = scmp.lt.s32.totalorder %s162, 9
          %s164 = scalar_select %p163, %s162, 9
          %s165 = smul.u32 128, %s164
          %s167 = ssub.s32 1152, %s165
          %168 = vsyncadd %s157, %s167
          %p169 = scmp.ne.s32.totalorder 0, %s165
          %s170 = smul.addr %s161, 128
          %s171 = scalar_lea.hbm %s0, %s170
          %s172 = smul.u32 8, %s164
          %s173 = sshll.u32 %s160, 4
          %s174 = int_to_ptr.vmem [resolvable:$true] %s173
          %s175 = sshll.u32 %s172, 4
          %179 = dma.hbm_to_vmem [thread:$0]  (%p169), %s171, %s175, %s174, %s157, 128, 128, 8
        $region28: #{tpu_custom_call.1} parent=23 // pred_fallthru
          _
      $region24: #{tpu_custom_call.1} parent=5 // pred_fallthru
        _
      %p180 = scmp.le.s32.totalorder 1, %s16
      %p181 = scmp.lt.s32.totalorder %s16, 5
      %p182 = pnand %p180, %p181
      %p183 = pneg %p182
      // Predicated region
      $region29: #{tpu_custom_call.1} parent=5 // pred_check
        _
      $region30: #{tpu_custom_call.1} parent=5 // pred_check_branch
        %185 = sbr.rel (%p182) target = $region32
      $region31: #{tpu_custom_call.1} parent=5 // pred_region
        %s186 = ssub.s32 %s16, 1
        %s187 = sand.u32 %s29, 1
        %s188 = scalar_lea.sflag [#allocation3], %s187
        %s189 = sand.u32 %s29, 1
        %s190 = smul.addr %s189, 72
        %s191 = scalar_lea.vmem [#allocation2], %s190
        // Predicated region
        $region33: #{tpu_custom_call.1} parent=31 // pred_check
          %p192 = pneg %p42
        $region34: #{tpu_custom_call.1} parent=31 // pred_check_branch
          %194 = sbr.rel (%p192) target = $region36
        $region35: #{tpu_custom_call.1} parent=31 // pred_region
          %195 = dma.done %s188, 1152
        $region36: #{tpu_custom_call.1} parent=31 // pred_fallthru
          _
        // Predicated region
        $region37: #{tpu_custom_call.1} parent=31 // pred_check
          %p196 = pneg %p63
        $region38: #{tpu_custom_call.1} parent=31 // pred_check_branch
          %198 = sbr.rel (%p196) target = $region40
        $region39: #{tpu_custom_call.1} parent=31 // pred_region
          %199 = dma.done [#allocation6], 8192
        $region40: #{tpu_custom_call.1} parent=31 // pred_fallthru
          _
        // Predicated region
        $region41: #{tpu_custom_call.1} parent=31 // pred_check
          %p200 = pneg %p84
        $region42: #{tpu_custom_call.1} parent=31 // pred_check_branch
          %202 = sbr.rel (%p200) target = $region44
        $region43: #{tpu_custom_call.1} parent=31 // pred_region
          %203 = dma.done [#allocation6], 64
        $region44: #{tpu_custom_call.1} parent=31 // pred_fallthru
          _
        %s204 = sand.u32 %s29, 1
        %s205 = scalar_lea.sflag [#allocation3], %s204
        %s206 = sand.u32 %s29, 1
        %s207 = smul.addr %s206, 72
        %s208 = scalar_lea.vmem [#allocation2], %s207
        %p209 = pneg %p42
        %p210 = pneg %p39
        %p211 = pneg %p63
        %p212 = pneg %p60
        %p213 = pneg %p84
        %p214 = pneg %p81
        %p215 = pneg %p110
        %p216 = pneg %p107
        %s217 = sand.u32 %s97, 1
        %s218 = scalar_lea.sflag [#allocation4], %s217
        %s219 = sand.u32 %s97, 1
        %s220 = smul.addr %s219, 288
        %s221 = scalar_lea.vmem [#allocation8], %s220
        %s222 = smul.u32 9, %s21
        %s223 = ssub.s32 33, %s222
        %p224 = scmp.lt.s32.totalorder %s223, 9
        %s225 = scalar_select %p224, %s223, 9
        %s226 = smul.u32 128, %s225
        %s227 = smul.u32 9, %s21
        %s228 = ssub.s32 33, %s227
        %p229 = scmp.lt.s32.totalorder %s228, 9
        %s230 = scalar_select %p229, %s228, 9
        %s231 = smul.u32 128, %s230
        %s232 = smul.u32 %s231, 4
        %v233 = vld [vmem:[%s191] sm:$0xff]
        %v234 = vld [vmem:[%s191 + $0x8] sm:$0xff]
        %v235 = vld [vmem:[%s191 + $0x10] sm:$0xff]
        %v236 = vld [vmem:[%s191 + $0x18] sm:$0xff]
        %v237 = vld [vmem:[%s191 + $0x20] sm:$0xff]
        %v238 = vld [vmem:[%s191 + $0x28] sm:$0xff]
        %v239 = vld [vmem:[%s191 + $0x30] sm:$0xff]
        %v240 = vld [vmem:[%s191 + $0x38] sm:$0xff]
        %v241 = vld [vmem:[%s191 + $0x40] sm:$0xff]
        %v242 = vld [vmem:[#allocation5] sm:$0xff]
        %v243 = vld [vmem:[#allocation5 + $0x8] sm:$0xff]
        %v244 = vld [vmem:[#allocation5 + $0x10] sm:$0xff]
        %v245 = vld [vmem:[#allocation5 + $0x18] sm:$0xff]
        %v246 = vld [vmem:[#allocation5 + $0x20] sm:$0xff]
        %v247 = vld [vmem:[#allocation5 + $0x28] sm:$0xff]
        %v248 = vld [vmem:[#allocation5 + $0x30] sm:$0xff]
        %v249 = vld [vmem:[#allocation5 + $0x38] sm:$0xff]
        %v250 = vld [vmem:[#allocation5 + $0x40] sm:$0xff]
        %v251 = vld [vmem:[#allocation5 + $0x48] sm:$0xff]
        %v252 = vld [vmem:[#allocation5 + $0x50] sm:$0xff]
        %v253 = vld [vmem:[#allocation5 + $0x58] sm:$0xff]
        %v254 = vld [vmem:[#allocation5 + $0x60] sm:$0xff]
        %v255 = vld [vmem:[#allocation5 + $0x68] sm:$0xff]
        %v256 = vld [vmem:[#allocation5 + $0x70] sm:$0xff]
        %v257 = vld [vmem:[#allocation5 + $0x78] sm:$0xff]
        %v258 = vld [vmem:[#allocation5 + $0x80] sm:$0xff]
        %v259 = vld [vmem:[#allocation5 + $0x88] sm:$0xff]
        %v260 = vld [vmem:[#allocation5 + $0x90] sm:$0xff]
        %v261 = vld [vmem:[#allocation5 + $0x98] sm:$0xff]
        %v262 = vld [vmem:[#allocation5 + $0xa0] sm:$0xff]
        %v263 = vld [vmem:[#allocation5 + $0xa8] sm:$0xff]
        %v264 = vld [vmem:[#allocation5 + $0xb0] sm:$0xff]
        %v265 = vld [vmem:[#allocation5 + $0xb8] sm:$0xff]
        %v266 = vld [vmem:[#allocation5 + $0xc0] sm:$0xff]
        %v267 = vld [vmem:[#allocation5 + $0xc8] sm:$0xff]
        %v268 = vld [vmem:[#allocation5 + $0xd0] sm:$0xff]
        %v269 = vld [vmem:[#allocation5 + $0xd8] sm:$0xff]
        %v270 = vld [vmem:[#allocation5 + $0xe0] sm:$0xff]
        %v271 = vld [vmem:[#allocation5 + $0xe8] sm:$0xff]
        %v272 = vld [vmem:[#allocation5 + $0xf0] sm:$0xff]
        %v273 = vld [vmem:[#allocation5 + $0xf8] sm:$0xff]
        %v274 = vld [vmem:[#allocation5 + $0x100] sm:$0xff]
        %v275 = vld [vmem:[#allocation5 + $0x108] sm:$0xff]
        %v276 = vld [vmem:[#allocation5 + $0x110] sm:$0xff]
        %v277 = vld [vmem:[#allocation5 + $0x118] sm:$0xff]
        %v278 = vld [vmem:[#allocation5 + $0x120] sm:$0xff]
        %v279 = vld [vmem:[#allocation5 + $0x128] sm:$0xff]
        %v280 = vld [vmem:[#allocation5 + $0x130] sm:$0xff]
        %v281 = vld [vmem:[#allocation5 + $0x138] sm:$0xff]
        %v282 = vld [vmem:[#allocation5 + $0x140] sm:$0xff]
        %v283 = vld [vmem:[#allocation5 + $0x148] sm:$0xff]
        %v284 = vld [vmem:[#allocation5 + $0x150] sm:$0xff]
        %v285 = vld [vmem:[#allocation5 + $0x158] sm:$0xff]
        %v286 = vld [vmem:[#allocation5 + $0x160] sm:$0xff]
        %v287 = vld [vmem:[#allocation5 + $0x168] sm:$0xff]
        %v288 = vld [vmem:[#allocation5 + $0x170] sm:$0xff]
        %v289 = vld [vmem:[#allocation5 + $0x178] sm:$0xff]
        %v290 = vld [vmem:[#allocation5 + $0x180] sm:$0xff]
        %v291 = vld [vmem:[#allocation5 + $0x188] sm:$0xff]
        %v292 = vld [vmem:[#allocation5 + $0x190] sm:$0xff]
        %v293 = vld [vmem:[#allocation5 + $0x198] sm:$0xff]
        %v294 = vld [vmem:[#allocation5 + $0x1a0] sm:$0xff]
        %v295 = vld [vmem:[#allocation5 + $0x1a8] sm:$0xff]
        %v296 = vld [vmem:[#allocation5 + $0x1b0] sm:$0xff]
        %v297 = vld [vmem:[#allocation5 + $0x1b8] sm:$0xff]
        %v298 = vld [vmem:[#allocation5 + $0x1c0] sm:$0xff]
        %v299 = vld [vmem:[#allocation5 + $0x1c8] sm:$0xff]
        %v300 = vld [vmem:[#allocation5 + $0x1d0] sm:$0xff]
        %v301 = vld [vmem:[#allocation5 + $0x1d8] sm:$0xff]
        %v302 = vld [vmem:[#allocation5 + $0x1e0] sm:$0xff]
        %v303 = vld [vmem:[#allocation5 + $0x1e8] sm:$0xff]
        %v304 = vld [vmem:[#allocation5 + $0x1f0] sm:$0xff]
        %v305 = vld [vmem:[#allocation5 + $0x1f8] sm:$0xff]
        %v306 = vld [vmem:[#allocation7] sm:$0xf]
        %v308 = vlaneseq
        %v309 = vshrl.u32 %v308, 7
        %v310 = vsub.s32 0, %v309
        %v311 = vrot.slane %v306, %v310
        %v312 = vlaneseq
        %v313 = vshrl.u32 %v312, 7
        %v314 = vsub.s32 1, %v313
        %v315 = vrot.slane %v306, %v314
        %v316 = vlaneseq
        %v317 = vshrl.u32 %v316, 7
        %v318 = vsub.s32 2, %v317
        %v319 = vrot.slane %v306, %v318
        %v320 = vlaneseq
        %v321 = vshrl.u32 %v320, 7
        %v322 = vsub.s32 3, %v321
        %v323 = vrot.slane %v306, %v322
        %328 = vmatprep.subr.mxu0 %v303
        %329 = vmatpush1.msra.mxu0 %v302
        %330 = vmatprep.subr.mxu0 %v299
        %331 = vmatpush1.msra.mxu0 %v298
        %332 = vmatprep.subr.mxu0 %v295
        %333 = vmatpush1.msra.mxu0 %v294
        %334 = vmatprep.subr.mxu0 %v291
        %335 = vmatpush1.msra.mxu0 %v290
        %336 = vmatprep.subr.mxu0 %v287
        %337 = vmatpush1.msra.mxu0 %v286
        %338 = vmatprep.subr.mxu0 %v283
        %339 = vmatpush1.msra.mxu0 %v282
        %340 = vmatprep.subr.mxu0 %v279
        %341 = vmatpush1.msra.mxu0 %v278
        %342 = vmatprep.subr.mxu0 %v275
        %343 = vmatpush1.msra.mxu0 %v274
        %344 = vmatprep.subr.mxu0 %v271
        %345 = vmatpush1.msra.mxu0 %v270
        %346 = vmatprep.subr.mxu0 %v267
        %347 = vmatpush1.msra.mxu0 %v266
        %348 = vmatprep.subr.mxu0 %v263
        %349 = vmatpush1.msra.mxu0 %v262
        %350 = vmatprep.subr.mxu0 %v259
        %351 = vmatpush1.msra.mxu0 %v258
        %352 = vmatprep.subr.mxu0 %v255
        %353 = vmatpush1.msra.mxu0 %v254
        %354 = vmatprep.subr.mxu0 %v251
        %355 = vmatpush1.msra.mxu0 %v250
        %356 = vmatprep.subr.mxu0 %v247
        %357 = vmatpush1.msra.mxu0 %v246
        %358 = vmatprep.subr.mxu0 %v243
        %359 = vmatpush1.msra.mxu0 %v242
        %360 = vmatprep.subr.mxu0 0.0
        %361 = vmatpush2.msra.mxu0 0.0
        %362 = vmatprep.subr.mxu0 0.0
        %363 = vmatpush2.msra.mxu0 0.0
        %364 = vmatprep.subr.mxu0 0.0
        %365 = vmatpush2.msra.mxu0 0.0
        %366 = vmatprep.subr.mxu0 0.0
        %367 = vmatpush2.msra.mxu0 0.0
        %368 = vmatprep.subr.mxu0 0.0
        %369 = vmatpush2.msra.mxu0 0.0
        %370 = vmatprep.subr.mxu0 0.0
        %371 = vmatpush2.msra.mxu0 0.0
        %372 = vmatprep.subr.mxu0 0.0
        %373 = vmatpush2.msra.mxu0 0.0
        %374 = vmatprep.subr.mxu0 0.0
        %375 = vmatpush2.msra.mxu0 0.0
        %376 = vmatprep.subr.mxu0 0.0
        %377 = vmatpush2.msra.mxu0 0.0
        %378 = vmatprep.subr.mxu0 0.0
        %379 = vmatpush2.msra.mxu0 0.0
        %380 = vmatprep.subr.mxu0 0.0
        %381 = vmatpush2.msra.mxu0 0.0
        %382 = vmatprep.subr.mxu0 0.0
        %383 = vmatpush2.msra.mxu0 0.0
        %384 = vmatprep.subr.mxu0 0.0
        %385 = vmatpush2.msra.mxu0 0.0
        %386 = vmatprep.subr.mxu0 0.0
        %387 = vmatpush2.msra.mxu0 0.0
        %388 = vmatprep.subr.mxu0 0.0
        %389 = vmatpush2.msra.mxu0 0.0
        %390 = vmatprep.subr.mxu0 0.0
        %391 = vmatpush2.msra.mxu0 0.0
        %392 = vmatprep.mubr.f32.mxu0 0.0
        %393 = vmatmul.mubr.f32.gmra.mxu0 %v233
        %v394 = vpop.f32.mrf.mxu0
        %v395 = vadd.f32 %v311, %v394
        %v396 = vpop.f32.mrf.mxu0
        %v397 = vadd.f32 %v315, %v396
        %398 = vmatprep.mubr.f32.mxu0 0.0
        %399 = vmatmul.mubr.f32.gmra.mxu0 %v234
        %v400 = vpop.f32.mrf.mxu0
        %v401 = vadd.f32 %v311, %v400
        %v402 = vpop.f32.mrf.mxu0
        %v403 = vadd.f32 %v315, %v402
        %404 = vmatprep.mubr.f32.mxu0 0.0
        %405 = vmatmul.mubr.f32.gmra.mxu0 %v235
        %v406 = vpop.f32.mrf.mxu0
        %v407 = vadd.f32 %v311, %v406
        %v408 = vpop.f32.mrf.mxu0
        %v409 = vadd.f32 %v315, %v408
        %410 = vmatprep.mubr.f32.mxu0 0.0
        %411 = vmatmul.mubr.f32.gmra.mxu0 %v236
        %v412 = vpop.f32.mrf.mxu0
        %v413 = vadd.f32 %v311, %v412
        %v414 = vpop.f32.mrf.mxu0
        %v415 = vadd.f32 %v315, %v414
        %416 = vmatprep.mubr.f32.mxu0 0.0
        %417 = vmatmul.mubr.f32.gmra.mxu0 %v237
        %v418 = vpop.f32.mrf.mxu0
        %v419 = vadd.f32 %v311, %v418
        %v420 = vpop.f32.mrf.mxu0
        %v421 = vadd.f32 %v315, %v420
        %422 = vmatprep.mubr.f32.mxu0 0.0
        %423 = vmatmul.mubr.f32.gmra.mxu0 %v238
        %v424 = vpop.f32.mrf.mxu0
        %v425 = vadd.f32 %v311, %v424
        %v426 = vpop.f32.mrf.mxu0
        %v427 = vadd.f32 %v315, %v426
        %428 = vmatprep.mubr.f32.mxu0 0.0
        %429 = vmatmul.mubr.f32.gmra.mxu0 %v239
        %v430 = vpop.f32.mrf.mxu0
        %v431 = vadd.f32 %v311, %v430
        %v432 = vpop.f32.mrf.mxu0
        %v433 = vadd.f32 %v315, %v432
        %434 = vmatprep.mubr.f32.mxu0 0.0
        %435 = vmatmul.mubr.f32.gmra.mxu0 %v240
        %v436 = vpop.f32.mrf.mxu0
        %v437 = vadd.f32 %v311, %v436
        %v438 = vpop.f32.mrf.mxu0
        %v439 = vadd.f32 %v315, %v438
        %440 = vmatprep.mubr.f32.mxu0 0.0
        %441 = vmatmul.mubr.f32.gmra.mxu0 %v241
        %v442 = vpop.f32.mrf.mxu0
        %v443 = vadd.f32 %v311, %v442
        %v444 = vpop.f32.mrf.mxu0
        %v445 = vadd.f32 %v315, %v444
        %446 = vdwg.mxu0
        %447 = vmatprep.subr.mxu0 %v305
        %448 = vmatpush1.msra.mxu0 %v304
        %449 = vmatprep.subr.mxu0 %v301
        %450 = vmatpush1.msra.mxu0 %v300
        %451 = vmatprep.subr.mxu0 %v297
        %452 = vmatpush1.msra.mxu0 %v296
        %453 = vmatprep.subr.mxu0 %v293
        %454 = vmatpush1.msra.mxu0 %v292
        %455 = vmatprep.subr.mxu0 %v289
        %456 = vmatpush1.msra.mxu0 %v288
        %457 = vmatprep.subr.mxu0 %v285
        %458 = vmatpush1.msra.mxu0 %v284
        %459 = vmatprep.subr.mxu0 %v281
        %460 = vmatpush1.msra.mxu0 %v280
        %461 = vmatprep.subr.mxu0 %v277
        %462 = vmatpush1.msra.mxu0 %v276
        %463 = vmatprep.subr.mxu0 %v273
        %464 = vmatpush1.msra.mxu0 %v272
        %465 = vmatprep.subr.mxu0 %v269
        %466 = vmatpush1.msra.mxu0 %v268
        %467 = vmatprep.subr.mxu0 %v265
        %468 = vmatpush1.msra.mxu0 %v264
        %469 = vmatprep.subr.mxu0 %v261
        %470 = vmatpush1.msra.mxu0 %v260
        %471 = vmatprep.subr.mxu0 %v257
        %472 = vmatpush1.msra.mxu0 %v256
        %473 = vmatprep.subr.mxu0 %v253
        %474 = vmatpush1.msra.mxu0 %v252
        %475 = vmatprep.subr.mxu0 %v249
        %476 = vmatpush1.msra.mxu0 %v248
        %477 = vmatprep.subr.mxu0 %v245
        %478 = vmatpush1.msra.mxu0 %v244
        %479 = vmatprep.subr.mxu0 0.0
        %480 = vmatpush2.msra.mxu0 0.0
        %481 = vmatprep.subr.mxu0 0.0
        %482 = vmatpush2.msra.mxu0 0.0
        %483 = vmatprep.subr.mxu0 0.0
        %484 = vmatpush2.msra.mxu0 0.0
        %485 = vmatprep.subr.mxu0 0.0
        %486 = vmatpush2.msra.mxu0 0.0
        %487 = vmatprep.subr.mxu0 0.0
        %488 = vmatpush2.msra.mxu0 0.0
        %489 = vmatprep.subr.mxu0 0.0
        %490 = vmatpush2.msra.mxu0 0.0
        %491 = vmatprep.subr.mxu0 0.0
        %492 = vmatpush2.msra.mxu0 0.0
        %493 = vmatprep.subr.mxu0 0.0
        %494 = vmatpush2.msra.mxu0 0.0
        %495 = vmatprep.subr.mxu0 0.0
        %496 = vmatpush2.msra.mxu0 0.0
        %497 = vmatprep.subr.mxu0 0.0
        %498 = vmatpush2.msra.mxu0 0.0
        %499 = vmatprep.subr.mxu0 0.0
        %500 = vmatpush2.msra.mxu0 0.0
        %501 = vmatprep.subr.mxu0 0.0
        %502 = vmatpush2.msra.mxu0 0.0
        %503 = vmatprep.subr.mxu0 0.0
        %504 = vmatpush2.msra.mxu0 0.0
        %505 = vmatprep.subr.mxu0 0.0
        %506 = vmatpush2.msra.mxu0 0.0
        %507 = vmatprep.subr.mxu0 0.0
        %508 = vmatpush2.msra.mxu0 0.0
        %509 = vmatprep.subr.mxu0 0.0
        %510 = vmatpush2.msra.mxu0 0.0
        %511 = vmatprep.mubr.f32.mxu0 0.0
        %512 = vmatmul.mubr.f32.gmra.mxu0 %v233
        %v513 = vpop.f32.mrf.mxu0
        %v514 = vadd.f32 %v319, %v513
        %v515 = vpop.f32.mrf.mxu0
        %v516 = vadd.f32 %v323, %v515
        %517 = vmatprep.mubr.f32.mxu0 0.0
        %518 = vmatmul.mubr.f32.gmra.mxu0 %v234
        %v519 = vpop.f32.mrf.mxu0
        %v520 = vadd.f32 %v319, %v519
        %v521 = vpop.f32.mrf.mxu0
        %v522 = vadd.f32 %v323, %v521
        %523 = vmatprep.mubr.f32.mxu0 0.0
        %524 = vmatmul.mubr.f32.gmra.mxu0 %v235
        %v525 = vpop.f32.mrf.mxu0
        %v526 = vadd.f32 %v319, %v525
        %v527 = vpop.f32.mrf.mxu0
        %v528 = vadd.f32 %v323, %v527
        %529 = vmatprep.mubr.f32.mxu0 0.0
        %530 = vmatmul.mubr.f32.gmra.mxu0 %v236
        %v531 = vpop.f32.mrf.mxu0
        %v532 = vadd.f32 %v319, %v531
        %v533 = vpop.f32.mrf.mxu0
        %v534 = vadd.f32 %v323, %v533
        %535 = vmatprep.mubr.f32.mxu0 0.0
        %536 = vmatmul.mubr.f32.gmra.mxu0 %v237
        %v537 = vpop.f32.mrf.mxu0
        %v538 = vadd.f32 %v319, %v537
        %v539 = vpop.f32.mrf.mxu0
        %v540 = vadd.f32 %v323, %v539
        %541 = vmatprep.mubr.f32.mxu0 0.0
        %542 = vmatmul.mubr.f32.gmra.mxu0 %v238
        %v543 = vpop.f32.mrf.mxu0
        %v544 = vadd.f32 %v319, %v543
        %v545 = vpop.f32.mrf.mxu0
        %v546 = vadd.f32 %v323, %v545
        %547 = vmatprep.mubr.f32.mxu0 0.0
        %548 = vmatmul.mubr.f32.gmra.mxu0 %v239
        %v549 = vpop.f32.mrf.mxu0
        %v550 = vadd.f32 %v319, %v549
        %v551 = vpop.f32.mrf.mxu0
        %v552 = vadd.f32 %v323, %v551
        %553 = vmatprep.mubr.f32.mxu0 0.0
        %554 = vmatmul.mubr.f32.gmra.mxu0 %v240
        %v555 = vpop.f32.mrf.mxu0
        %v556 = vadd.f32 %v319, %v555
        %v557 = vpop.f32.mrf.mxu0
        %v558 = vadd.f32 %v323, %v557
        %559 = vmatprep.mubr.f32.mxu0 0.0
        %560 = vmatmul.mubr.f32.gmra.mxu0 %v241
        %v561 = vpop.f32.mrf.mxu0
        %v562 = vadd.f32 %v319, %v561
        %v563 = vpop.f32.mrf.mxu0
        %v564 = vadd.f32 %v323, %v563
        %565 = vdwg.mxu0
        %v566 = vmax.f32 %v395, 0.0
        %v567 = vmax.f32 %v397, 0.0
        %v568 = vmax.f32 %v514, 0.0
        %v569 = vmax.f32 %v516, 0.0
        %v570 = vmax.f32 %v401, 0.0
        %v571 = vmax.f32 %v403, 0.0
        %v572 = vmax.f32 %v520, 0.0
        %v573 = vmax.f32 %v522, 0.0
        %v574 = vmax.f32 %v407, 0.0
        %v575 = vmax.f32 %v409, 0.0
        %v576 = vmax.f32 %v526, 0.0
        %v577 = vmax.f32 %v528, 0.0
        %v578 = vmax.f32 %v413, 0.0
        %v579 = vmax.f32 %v415, 0.0
        %v580 = vmax.f32 %v532, 0.0
        %v581 = vmax.f32 %v534, 0.0
        %v582 = vmax.f32 %v419, 0.0
        %v583 = vmax.f32 %v421, 0.0
        %v584 = vmax.f32 %v538, 0.0
        %v585 = vmax.f32 %v540, 0.0
        %v586 = vmax.f32 %v425, 0.0
        %v587 = vmax.f32 %v427, 0.0
        %v588 = vmax.f32 %v544, 0.0
        %v589 = vmax.f32 %v546, 0.0
        %v590 = vmax.f32 %v431, 0.0
        %v591 = vmax.f32 %v433, 0.0
        %v592 = vmax.f32 %v550, 0.0
        %v593 = vmax.f32 %v552, 0.0
        %v594 = vmax.f32 %v437, 0.0
        %v595 = vmax.f32 %v439, 0.0
        %v596 = vmax.f32 %v556, 0.0
        %v597 = vmax.f32 %v558, 0.0
        %v598 = vmax.f32 %v443, 0.0
        %v599 = vmax.f32 %v445, 0.0
        %v600 = vmax.f32 %v562, 0.0
        %v601 = vmax.f32 %v564, 0.0
        %602 = vst [vmem:[%s221] sm:$0xff] %v566
        %603 = vst [vmem:[%s221 + $0x8] sm:$0xff] %v567
        %604 = vst [vmem:[%s221 + $0x10] sm:$0xff] %v568
        %605 = vst [vmem:[%s221 + $0x18] sm:$0xff] %v569
        %606 = vst [vmem:[%s221 + $0x20] sm:$0xff] %v570
        %607 = vst [vmem:[%s221 + $0x28] sm:$0xff] %v571
        %608 = vst [vmem:[%s221 + $0x30] sm:$0xff] %v572
        %609 = vst [vmem:[%s221 + $0x38] sm:$0xff] %v573
        %610 = vst [vmem:[%s221 + $0x40] sm:$0xff] %v574
        %611 = vst [vmem:[%s221 + $0x48] sm:$0xff] %v575
        %612 = vst [vmem:[%s221 + $0x50] sm:$0xff] %v576
        %613 = vst [vmem:[%s221 + $0x58] sm:$0xff] %v577
        %614 = vst [vmem:[%s221 + $0x60] sm:$0xff] %v578
        %615 = vst [vmem:[%s221 + $0x68] sm:$0xff] %v579
        %616 = vst [vmem:[%s221 + $0x70] sm:$0xff] %v580
        %617 = vst [vmem:[%s221 + $0x78] sm:$0xff] %v581
        %618 = vst [vmem:[%s221 + $0x80] sm:$0xff] %v582
        %619 = vst [vmem:[%s221 + $0x88] sm:$0xff] %v583
        %620 = vst [vmem:[%s221 + $0x90] sm:$0xff] %v584
        %621 = vst [vmem:[%s221 + $0x98] sm:$0xff] %v585
        %622 = vst [vmem:[%s221 + $0xa0] sm:$0xff] %v586
        %623 = vst [vmem:[%s221 + $0xa8] sm:$0xff] %v587
        %624 = vst [vmem:[%s221 + $0xb0] sm:$0xff] %v588
        %625 = vst [vmem:[%s221 + $0xb8] sm:$0xff] %v589
        %626 = vst [vmem:[%s221 + $0xc0] sm:$0xff] %v590
        %627 = vst [vmem:[%s221 + $0xc8] sm:$0xff] %v591
        %628 = vst [vmem:[%s221 + $0xd0] sm:$0xff] %v592
        %629 = vst [vmem:[%s221 + $0xd8] sm:$0xff] %v593
        %630 = vst [vmem:[%s221 + $0xe0] sm:$0xff] %v594
        %631 = vst [vmem:[%s221 + $0xe8] sm:$0xff] %v595
        %632 = vst [vmem:[%s221 + $0xf0] sm:$0xff] %v596
        %633 = vst [vmem:[%s221 + $0xf8] sm:$0xff] %v597
        %634 = vst [vmem:[%s221 + $0x100] sm:$0xff] %v598
        %635 = vst [vmem:[%s221 + $0x108] sm:$0xff] %v599
        %636 = vst [vmem:[%s221 + $0x110] sm:$0xff] %v600
        %637 = vst [vmem:[%s221 + $0x118] sm:$0xff] %v601
        %s638 = sand.u32 %s97, 1
        %s639 = scalar_lea.sflag [#allocation4], %s638
        %s640 = sand.u32 %s97, 1
        %s641 = smul.addr %s640, 288
        %s642 = scalar_lea.vmem [#allocation8], %s641
        // Predicated region
        $region45: #{tpu_custom_call.1} parent=31 // pred_check
          %p643 = pneg %p107
        $region46: #{tpu_custom_call.1} parent=31 // pred_check_branch
          %645 = sbr.rel (%p643) target = $region48
        $region47: #{tpu_custom_call.1} parent=31 // pred_region
          %s646 = smul.u32 9, %s21
          %s647 = ssub.s32 33, %s646
          %p648 = scmp.lt.s32.totalorder %s647, 9
          %s649 = scalar_select %p648, %s647, 9
          %s650 = smul.u32 128, %s649
          %s651 = smul.u32 %s650, 4
          %s653 = ssub.s32 4608, %s651
          %654 = vsyncadd %s639, %s653
          %p655 = scmp.ne.s32.totalorder 0, %s651
          %s656 = smul.addr %s646, 4
          %s657 = smul.addr %s656, 128
          %s658 = scalar_lea.hbm %s3, %s657
          %s659 = smul.u32 32, %s649
          %s660 = sshll.u32 %s642, 4
          %s661 = int_to_ptr.vmem [resolvable:$true] %s660
          %s662 = sshll.u32 %s659, 4
          %666 = dma.vmem_to_hbm [thread:$0]  (%p655), %s661, %s662, %s658, %s639, 512, 512, 32
        $region48: #{tpu_custom_call.1} parent=31 // pred_fallthru
          _
      $region32: #{tpu_custom_call.1} parent=5 // pred_fallthru
        _
      %p667 = scmp.le.s32.totalorder 2, %s16
      // Predicated region
      $region49: #{tpu_custom_call.1} parent=5 // pred_check
        %p668 = pneg %p667
      $region50: #{tpu_custom_call.1} parent=5 // pred_check_branch
        %670 = sbr.rel (%p668) target = $region52
      $region51: #{tpu_custom_call.1} parent=5 // pred_region
        %s671 = ssub.s32 %s16, 2
        // Predicated region
        $region53: #{tpu_custom_call.1} parent=51 // pred_check
          %p672 = pneg %p113
        $region54: #{tpu_custom_call.1} parent=51 // pred_check_branch
          %674 = sbr.rel (%p672) target = $region56
        $region55: #{tpu_custom_call.1} parent=51 // pred_region
          %s675 = sand.u32 %s98, 1
          %s676 = scalar_lea.sflag [#allocation4], %s675
          %s677 = sand.u32 %s98, 1
          %s678 = smul.addr %s677, 288
          %s679 = scalar_lea.vmem [#allocation8], %s678
          %680 = dma.done %s676, 4608
        $region56: #{tpu_custom_call.1} parent=51 // pred_fallthru
          _
      $region52: #{tpu_custom_call.1} parent=5 // pred_fallthru
        _
    $region6: #{tpu_custom_call.1} parent=1 // loop_footer
      %s20 = sadd.s32 1, %s16
    $region7: #{tpu_custom_call.1} parent=1 // loop_footer_branch
      %15 = sbr.rel target = $region3
    $region8: #{tpu_custom_call.1} parent=1 // loop_exit
      _
    %681 = vsyncpa [#allocation3], 1
    %s682 = scalar_lea.sflag [#allocation3], 1
    %683 = vsyncpa %s682, 1
    %684 = vsyncpa [#allocation6], 1
    %685 = vsyncpa [#allocation4], 1
    %s686 = scalar_lea.sflag [#allocation4], 1
    %687 = vsyncpa %s686, 1

</llo_original>
